<compile_context>
chip_gen: v6e
topology: v6e:2x2x1
jax: 0.10.0
libtpu: 0.0.40
codegen_flags: <defaults>
</compile_context>

<pallas_src>
import jax
import jax.numpy as jnp
from jax.experimental import pallas as pl
from jax.experimental.pallas import tpu as pltpu


_LANES = 128
_TARGET_BLOCK_BYTES = 4 * 1024 * 1024      # per-input per-buffer block size
_MIN_PALLAS_ELEMS = 256 * 1024             # below this, plain XLA wins


def _round_up(a: int, b: int) -> int:
    return -(-a // b) * b


def _sublane_min(dtype) -> int:
    # Packed-sublane minimum: 8 for 4-byte, 16 for 2-byte, 32 for 1-byte dtypes.
    itemsize = jnp.dtype(dtype).itemsize
    return max(8, 32 // max(itemsize, 1))


def _make_kl_partial_kernel(tile_rows: int, cols: int, valid_rows: int,
                            needs_mask: bool):
    """Builds the per-block partial-sum kernel (all parameters are static)."""

    def kernel(mu_ref, lv_ref, out_ref):
        # Native-dtype loads; upcast in-kernel (free vs. the DMA stream).
        mu = mu_ref[...].astype(jnp.float32)
        lv = lv_ref[...].astype(jnp.float32)
        # KL integrand: mu^2 + exp(log_var) - log_var - 1  (exactly 0 at 0, 0).
        term = mu * mu + jnp.exp(lv) - lv - 1.0
        if needs_mask:
            # The last grid block overruns the true row count; out-of-bounds
            # block contents are unspecified, so zero those rows.
            row0 = pl.program_id(0) * tile_rows
            row_idx = row0 + jax.lax.broadcasted_iota(
                jnp.int32, (tile_rows, cols), 0)
            term = jnp.where(row_idx < valid_rows, term, 0.0)
        # Collapse (tile_rows, cols) -> (8, cols): groups of 8 consecutive rows
        # are whole vreg tiles, so this is a tree of full-vreg VPU adds (no
        # cross-lane XLU reduce, no serial accumulator).
        out_ref[...] = jnp.sum(term.reshape(-1, 8, cols), axis=0)

    return kernel


def kl_div_loss_ref(mu, log_var, lambd: float = 1.0):
    """Pure-JAX reference matching the PyTorch module exactly."""
    lambd_eff = min(0.001, float(lambd))
    mu32 = mu.astype(jnp.float32)
    lv32 = log_var.astype(jnp.float32)
    per_sample = 0.5 * jnp.sum(-lv32 - 1.0 + mu32 * mu32 + jnp.exp(lv32), axis=1)
    return (lambd_eff * jnp.mean(per_sample)).astype(jnp.float32)


def kl_div_loss(mu, log_var, lambd: float = 1.0, *,
                tile_rows: int | None = None,
                use_pallas: bool | None = None):
    """Pallas implementation of KLDivLoss.forward.  Returns a scalar f32."""
    assert mu.shape == log_var.shape and mu.ndim == 2
    n, d = mu.shape
    total = mu.size

    # PyTorch module clamps lambd on every call: lambd = min(0.001, lambd).
    lambd_eff = min(0.001, float(lambd))
    # sum over dim=1 then mean over batch == (1/N) * full sum.
    scale = 0.5 * lambd_eff / n

    if use_pallas is None:
        # For tiny inputs the fixed pallas_call launch cost dwarfs the <1 us
        # of useful HBM traffic; plain XLA fuses this into a few vector ops.
        use_pallas = total >= _MIN_PALLAS_ELEMS
    if not use_pallas:
        return kl_div_loss_ref(mu, log_var, lambd)

    itemsize_mu = jnp.dtype(mu.dtype).itemsize
    itemsize_lv = jnp.dtype(log_var.dtype).itemsize
    itemsize = max(itemsize_mu, itemsize_lv)
    sub = max(_sublane_min(mu.dtype), _sublane_min(log_var.dtype))

    # Choose the 2-D view presented to Pallas (no extra HBM pass either way).
    if total % _LANES == 0:
        view_rows, view_cols = total // _LANES, _LANES   # free bitcast reshape
    else:
        view_rows, view_cols = n, d                      # tile (N, D) directly

    # Pathological guard: one minimum-height block must fit comfortably in VMEM.
    if sub * view_cols * itemsize * 4 > 24 * 1024 * 1024:
        # TODO(synk): absurdly wide unaligned rows -- let fused XLA handle it.
        return kl_div_loss_ref(mu, log_var, lambd)

    # ~4 MiB per input block; 2 inputs x 2 pipeline buffers = 16 MiB, under the
    # 32 MiB scoped-VMEM limit set below (safe on v5e/v6e, and within v7x's
    # 64 MiB physical VMEM shared by both TensorCores).
    max_tile_rows = max(sub,
                        (_TARGET_BLOCK_BYTES // (view_cols * itemsize)) // sub * sub)

    if tile_rows is None:
        if view_rows <= 2 * sub:
            tile_rows = _round_up(view_rows, sub)
        else:
            # At least 2 grid blocks so the "parallel" axis can shard across
            # both v7x TensorCores; capped to amortize per-step overhead while
            # staying inside scoped VMEM.
            tile_rows = min(max_tile_rows, _round_up(-(-view_rows // 2), sub))
    assert tile_rows % 8 == 0 and tile_rows % sub == 0, tile_rows

    num_blocks = -(-view_rows // tile_rows)

    # Only a tiny single block may need wrapper-side padding (block taller than
    # the whole array); multi-block ragged tails are masked inside the kernel.
    padded_rows = tile_rows if (num_blocks == 1 and tile_rows > view_rows) else view_rows
    needs_mask = (view_rows % tile_rows != 0) and (padded_rows == view_rows)

    def _as_view(x):
        if view_cols == _LANES:
            flat = jnp.ravel(x)                      # bitcast for contiguous x
            pad = padded_rows * _LANES - total
            if pad:                                  # tiny single-block only
                flat = jnp.pad(flat, (0, pad))       # zeros contribute exactly 0
            return flat.reshape(padded_rows, _LANES)
        if padded_rows != n:                         # tiny single-block only
            x = jnp.pad(x, ((0, padded_rows - n), (0, 0)))
        return x

    mu_v = _as_view(mu)
    lv_v = _as_view(log_var)

    cost = pl.CostEstimate(
        flops=5 * total,
        transcendentals=total,
        bytes_accessed=(padded_rows * view_cols * (itemsize_mu + itemsize_lv)
                        + num_blocks * 8 * view_cols * 4),
    )

    kernel = _make_kl_partial_kernel(tile_rows, view_cols, view_rows, needs_mask)

    partials = pl.pallas_call(
        kernel,
        out_shape=jax.ShapeDtypeStruct((8 * num_blocks, view_cols), jnp.float32),
        grid_spec=pltpu.PrefetchScalarGridSpec(
            num_scalar_prefetch=0,
            grid=(num_blocks,),
            in_specs=[
                pl.BlockSpec((tile_rows, view_cols), lambda i: (i, 0)),
                pl.BlockSpec((tile_rows, view_cols), lambda i: (i, 0)),
            ],
            out_specs=pl.BlockSpec((8, view_cols), lambda i: (i, 0)),
        ),
        compiler_params=pltpu.CompilerParams(
            # Per-block partials are independent -> parallel grid axis
            # (shards across both TensorCores on v7x; harmless on v5e/v6e).
            dimension_semantics=("parallel",),
            vmem_limit_bytes=32 * 1024 * 1024,
        ),
        cost_estimate=cost,
    )(mu_v, lv_v)

    # Tiny final reduction + scaling in plain JAX (scale stays outside the
    # kernel so changing lambd / N does not force a kernel recompile).
    return (jnp.float32(scale) * jnp.sum(partials)).astype(jnp.float32)


if __name__ == "__main__":
    key = jax.random.PRNGKey(0)
    k1, k2, k3, k4, k5, k6 = jax.random.split(key, 6)

    # 1) Small VAE-latent shapes (batch=8, latent_dim=32): lane-aligned total,
    #    tiny single-block path (kernel forced so the Pallas path is exercised).
    N, D = 8, 32
    mu = jax.random.normal(k1, (N, D), dtype=jnp.float32)
    log_var = jax.random.normal(k2, (N, D), dtype=jnp.float32) * 0.5
    out = jax.block_until_ready(kl_div_loss(mu, log_var, lambd=1.0, use_pallas=True))
    ref = kl_div_loss_ref(mu, log_var, lambd=1.0)
    assert jnp.allclose(out, ref, rtol=1e-5, atol=1e-6), (out, ref)

    # 2) Lane-aligned, multi-block path (free reshape, 2 parallel grid blocks).
    N2, D2 = 16, 256
    mu2 = jax.random.normal(k3, (N2, D2), dtype=jnp.float32)
    lv2 = jax.random.normal(k4, (N2, D2), dtype=jnp.float32) * 0.5
    out2 = jax.block_until_ready(kl_div_loss(mu2, lv2, lambd=0.5, use_pallas=True))
    ref2 = kl_div_loss_ref(mu2, lv2, lambd=0.5)
    assert jnp.allclose(out2, ref2, rtol=1e-5, atol=1e-6), (out2, ref2)

    # 3) Unaligned D: direct (N, D) tiling, ragged last block masked in-kernel.
    N3, D3 = 30, 33
    mu3 = jax.random.normal(k5, (N3, D3), dtype=jnp.float32)
    lv3 = jax.random.normal(k6, (N3, D3), dtype=jnp.float32) * 0.5
    out3 = jax.block_until_ready(kl_div_loss(mu3, lv3, lambd=1.0, use_pallas=True))
    ref3 = kl_div_loss_ref(mu3, lv3, lambd=1.0)
    assert jnp.allclose(out3, ref3, rtol=1e-5, atol=1e-6), (out3, ref3)

    print("KERNEL_OK")
</pallas_src>

<mosaic_0001>
module attributes {stable_mosaic.version = 11 : i64} {
  func.func @kernel(%arg0: i32, %arg1: memref<8x128xf32, #tpu.memory_space<vmem>>, %arg2: memref<8x128xf32, #tpu.memory_space<vmem>>, %arg3: memref<8x128xf32, #tpu.memory_space<vmem>>) attributes {dimension_semantics = [#tpu.dimension_semantics<parallel>], iteration_bounds = array<i64: 1>, scalar_prefetch = 0 : i64, scratch_operands = 0 : i64, tpu.core_type = #tpu.core_type<tc>, window_params = [{transform_indices = @transform_0, window_bounds = array<i64: 8, 128>}, {transform_indices = @transform_1, window_bounds = array<i64: 8, 128>}, {transform_indices = @transform_2, window_bounds = array<i64: 8, 128>}]} {
    %c0 = arith.constant 0 : index
    %c0_0 = arith.constant 0 : index
    %0 = vector.load %arg1[%c0, %c0_0] : memref<8x128xf32, #tpu.memory_space<vmem>>, vector<8x128xf32>
    %c0_1 = arith.constant 0 : index
    %c0_2 = arith.constant 0 : index
    %1 = vector.load %arg2[%c0_1, %c0_2] : memref<8x128xf32, #tpu.memory_space<vmem>>, vector<8x128xf32>
    %2 = arith.mulf %0, %0 : vector<8x128xf32>
    %3 = math.exp %1 : vector<8x128xf32>
    %4 = arith.addf %2, %3 : vector<8x128xf32>
    %5 = arith.subf %4, %1 : vector<8x128xf32>
    %cst = arith.constant 1.000000e+00 : f32
    %6 = vector.broadcast %cst : f32 to vector<8x128xf32>
    %7 = arith.subf %5, %6 : vector<8x128xf32>
    %8 = vector.shape_cast %7 : vector<8x128xf32> to vector<1x8x128xf32>
    %cst_3 = arith.constant dense<0.000000e+00> : vector<8x128xf32>
    %9 = vector.multi_reduction <add>, %8, %cst_3 [0] : vector<1x8x128xf32> to vector<8x128xf32>
    %c0_4 = arith.constant 0 : index
    %c0_5 = arith.constant 0 : index
    %10 = vector.load %arg3[%c0_4, %c0_5] : memref<8x128xf32, #tpu.memory_space<vmem>>, vector<8x128xf32>
    tpu.vector_store %arg3[%c0_4, %c0_5], %9 {strides = array<i32>} : memref<8x128xf32, #tpu.memory_space<vmem>>, vector<8x128xf32>,
    return
  }
  func.func @transform_0(%arg0: i32) -> (i32, i32) {
    %c0_i32 = arith.constant 0 : i32
    %c0_i32_0 = arith.constant 0 : i32
    return %arg0, %c0_i32 : i32, i32
  }
  func.func @transform_1(%arg0: i32) -> (i32, i32) {
    %c0_i32 = arith.constant 0 : i32
    %c0_i32_0 = arith.constant 0 : i32
    return %arg0, %c0_i32 : i32, i32
  }
  func.func @transform_2(%arg0: i32) -> (i32, i32) {
    %c0_i32 = arith.constant 0 : i32
    %c0_i32_0 = arith.constant 0 : i32
    return %arg0, %c0_i32 : i32, i32
  }
}

</mosaic_0001>

<llo_original>
// kernel: tpu_custom_call.1
$region0: #{tpu_custom_call.1}
  #allocation0 [shape = 'u32[]', space=smem, size = 0x4, offset = 0x4, fixed_abs, tag = 'smem constant byte address 0x4 - core index']
  #allocation1 [shape = 'u32[144,128]{1,0:T(1,128)}', space=vmem, size = 0x12000, scoped, tag = 'internal scratch']
  %s0 = inlined_call_operand.hbm [shape: f32[8,128], index: 0, kind: input, shape index: {}]
  %s1 = inlined_call_operand.hbm [shape: f32[8,128], index: 1, kind: input, shape index: {}]
  %s2 = inlined_call_operand.hbm [shape: f32[8,128], index: 2, kind: output, shape index: {}]
  %s3 = sld [smem:[#allocation0]]
  $region26: #{tpu_custom_call.1} parent=0
    _
  %s5 = ssub.s32 1, %s3
  %s6 = scalar_select 0, %s5, %s3
  $region1: #{tpu_custom_call.1} parent=0
    #allocation2 [shape = 'u8[4096]{0}', space=vmem, size = 0x1000, scoped, tag = 'input window, operand 0, single buffered']
    #allocation3 [shape = 's32[1]{0}', space=sflag, size = 0x4, scoped, tag = 'scoped memory for tpu_custom_call.1']
    #allocation4 [shape = 's32[1]{0}', space=sflag, size = 0x4, scoped, tag = 'scoped memory for tpu_custom_call.1']
    #allocation5 [shape = 'u8[4096]{0}', space=vmem, size = 0x1000, scoped, tag = 'input window, operand 1, single buffered']
    #allocation6 [shape = 's32[1]{0}', space=sflag, size = 0x4, scoped, tag = 'scoped memory for tpu_custom_call.1']
    #allocation7 [shape = 'u8[4096]{0}', space=vmem, size = 0x1000, scoped, tag = 'output window, operand 0, single buffered']
    %7 = vsyncpa [#allocation3], 0
    %8 = vsyncpa [#allocation6], 0
    %9 = vsyncpa [#allocation4], 0
    // Predicated region
    $region2: #{tpu_custom_call.1} parent=1 // pred_check
      _
    $region3: #{tpu_custom_call.1} parent=1 // pred_check_branch
      %11 = sbr.rel (0) target = $region5
    $region4: #{tpu_custom_call.1} parent=1 // pred_region
      %s13 = ssub.s32 128, 128
      %14 = vsyncadd [#allocation3], %s13
      %s16 = sshll.u32 [#allocation2], 4
      %s17 = int_to_ptr.vmem [resolvable:$true] %s16
      %19 = dma.hbm_to_vmem [thread:$0]  %s0, 128, %s17, [#allocation3]
    $region5: #{tpu_custom_call.1} parent=1 // pred_fallthru
      _
    // Predicated region
    $region6: #{tpu_custom_call.1} parent=1 // pred_check
      _
    $region7: #{tpu_custom_call.1} parent=1 // pred_check_branch
      %21 = sbr.rel (0) target = $region9
    $region8: #{tpu_custom_call.1} parent=1 // pred_region
      %s23 = ssub.s32 128, 128
      %24 = vsyncadd [#allocation6], %s23
      %s26 = sshll.u32 [#allocation5], 4
      %s27 = int_to_ptr.vmem [resolvable:$true] %s26
      %29 = dma.hbm_to_vmem [thread:$0]  %s1, 128, %s27, [#allocation6]
    $region9: #{tpu_custom_call.1} parent=1 // pred_fallthru
      _
    // Predicated region
    $region10: #{tpu_custom_call.1} parent=1 // pred_check
      _
    $region11: #{tpu_custom_call.1} parent=1 // pred_check_branch
      %31 = sbr.rel (0) target = $region13
    $region12: #{tpu_custom_call.1} parent=1 // pred_region
      %32 = dma.done [#allocation3], 128
    $region13: #{tpu_custom_call.1} parent=1 // pred_fallthru
      _
    // Predicated region
    $region14: #{tpu_custom_call.1} parent=1 // pred_check
      _
    $region15: #{tpu_custom_call.1} parent=1 // pred_check_branch
      %34 = sbr.rel (0) target = $region17
    $region16: #{tpu_custom_call.1} parent=1 // pred_region
      %35 = dma.done [#allocation6], 128
    $region17: #{tpu_custom_call.1} parent=1 // pred_fallthru
      _
    %v36 = vld [vmem:[#allocation2] sm:$0xff]
    %v37 = vld [vmem:[#allocation5] sm:$0xff]
    %v38 = vmul.f32 %v36, %v36
    %v39 = vmul.f32 %v37, 1.442695
    %v40 = vpow.pop %v39
    %v41 = vadd.f32 %v38, %v40
    %v42 = vsub.f32 %v41, %v37
    %v43 = vsub.f32 %v42, 1.0
    %v44 = vadd.f32 %v43, 0.0
    %45 = vst [vmem:[#allocation7] sm:$0xff] %v44
    // Predicated region
    $region18: #{tpu_custom_call.1} parent=1 // pred_check
      _
    $region19: #{tpu_custom_call.1} parent=1 // pred_check_branch
      %47 = sbr.rel (0) target = $region21
    $region20: #{tpu_custom_call.1} parent=1 // pred_region
      %s49 = ssub.s32 128, 128
      %50 = vsyncadd [#allocation4], %s49
      %s52 = sshll.u32 [#allocation7], 4
      %s53 = int_to_ptr.vmem [resolvable:$true] %s52
      %55 = dma.vmem_to_hbm [thread:$0]  %s53, 128, %s2, [#allocation4]
    $region21: #{tpu_custom_call.1} parent=1 // pred_fallthru
      _
    // Predicated region
    $region22: #{tpu_custom_call.1} parent=1 // pred_check
      _
    $region23: #{tpu_custom_call.1} parent=1 // pred_check_branch
      %57 = sbr.rel (0) target = $region25
    $region24: #{tpu_custom_call.1} parent=1 // pred_region
      %58 = dma.done [#allocation4], 128
    $region25: #{tpu_custom_call.1} parent=1 // pred_fallthru
      _
    %59 = vsyncpa [#allocation3], 1
    %60 = vsyncpa [#allocation6], 1
    %61 = vsyncpa [#allocation4], 1

</llo_original>
